<compile_context>
chip_gen: v7x
topology: tpu7x:2x2x1
jax: 0.10.0
libtpu: 0.0.40
codegen_flags: <defaults>
</compile_context>

<pallas_src>
import math

import jax
import jax.numpy as jnp
from jax.experimental import pallas as pl
from jax.experimental.pallas import tpu as pltpu

NUM_CLASSES = 7
NUM_FEATURES = 13
HIDDEN = 64
NUM_LAYERS = 2

# Kernel-internal (padded) dims.
HP = 128            # hidden padded to one full vreg of lanes
FEAT_PAD = 16       # input features padded to a sublane multiple (not 128)
CP = 8              # classes padded to 8 -> narrow output slab (32 B/row)
NUM_GATES = 3       # [i, g, o]; forget gate dropped (c_prev == 0)

TILE_B_MAX = 1024   # max batch rows per grid step
MIN_SPLIT_B = 256   # above this, force >= 2 batch tiles (both TCs on v7x)


def _round_up(n, m):
    return ((n + m - 1) // m) * m


# ----------------------------------------------------------------------------
# Kernel
# ----------------------------------------------------------------------------
def _lstm_cell_zero_state(x_bf16, w_t_ref, b_ref):
    """One LSTM cell step with h_prev = c_prev = 0 (forget gate elided).

    x_bf16: (TB, in_pad)    bf16 input to this layer
    w_t:    (in_pad, 3*HP)  bf16, gate columns packed [i | g | o], each HP wide
    b:      (1, 3*HP)       f32  (b_ih + b_hh), same packing
    returns h: (TB, HP) f32; padded hidden lanes come out exactly 0.
    """
    gates = jnp.dot(x_bf16, w_t_ref[...],
                    preferred_element_type=jnp.float32) + b_ref[...]
    i = jax.nn.sigmoid(gates[:, 0 * HP:1 * HP])
    g = jnp.tanh(gates[:, 1 * HP:2 * HP])
    o = jax.nn.sigmoid(gates[:, 2 * HP:3 * HP])
    c = i * g                       # f * c_prev == 0 because c_prev == 0
    return o * jnp.tanh(c)


def audio_lstm_kernel(x_ref, w0_ref, b0_ref, w1_ref, b1_ref, wfc_ref, bfc_ref,
                      out_ref):
    x = x_ref[...]                                                  # (TB, FEAT_PAD) bf16
    h0 = _lstm_cell_zero_state(x, w0_ref, b0_ref)                   # (TB, HP) f32
    h1 = _lstm_cell_zero_state(h0.astype(jnp.bfloat16), w1_ref, b1_ref)
    logits = jnp.dot(h1.astype(jnp.bfloat16), wfc_ref[...],
                     preferred_element_type=jnp.float32) + bfc_ref[...]
    out_ref[...] = logits.astype(out_ref.dtype)                     # (TB, CP)


# ----------------------------------------------------------------------------
# One-time parameter packing (hoisted out of the forward path)
# ----------------------------------------------------------------------------
def _pack_lstm_layer(w_ih, b_ih, b_hh, in_pad):
    """Repack one PyTorch LSTM layer: drop the dead forget gate, transpose to
    (in, out), zero-pad input dim to `in_pad` and each gate's output dim to HP,
    cast weights to bf16.  Padded gate columns have zero weight & bias, so the
    padded hidden lanes evaluate to sigmoid(0)*tanh(sigmoid(0)*tanh(0)) = 0."""
    h = HIDDEN
    in_dim = w_ih.shape[1]
    w_i, _w_f, w_g, w_o = jnp.split(w_ih, 4, axis=0)       # (H, in) each
    b_i, _b_f, b_g, b_o = jnp.split(b_ih + b_hh, 4)
    w = jnp.zeros((in_pad, NUM_GATES * HP), jnp.float32)
    w = w.at[:in_dim, 0 * HP:0 * HP + h].set(w_i.T)
    w = w.at[:in_dim, 1 * HP:1 * HP + h].set(w_g.T)
    w = w.at[:in_dim, 2 * HP:2 * HP + h].set(w_o.T)
    b = jnp.zeros((1, NUM_GATES * HP), jnp.float32)
    b = b.at[0, 0 * HP:0 * HP + h].set(b_i)
    b = b.at[0, 1 * HP:1 * HP + h].set(b_g)
    b = b.at[0, 2 * HP:2 * HP + h].set(b_o)
    return w.astype(jnp.bfloat16), b


def pack_params(params):
    """Run ONCE at parameter-load time; the packed arrays are reused per call."""
    w0, b0 = _pack_lstm_layer(params["w_ih_l0"], params["b_ih_l0"],
                              params["b_hh_l0"], FEAT_PAD)
    w1, b1 = _pack_lstm_layer(params["w_ih_l1"], params["b_ih_l1"],
                              params["b_hh_l1"], HP)
    wfc = jnp.zeros((HP, CP), jnp.float32)
    wfc = wfc.at[:HIDDEN, :NUM_CLASSES].set(params["w_fc"].T).astype(jnp.bfloat16)
    bfc = jnp.zeros((1, CP), jnp.float32).at[0, :NUM_CLASSES].set(params["b_fc"])
    return {"w0": w0, "b0": b0, "w1": w1, "b1": b1, "wfc": wfc, "bfc": bfc}


# ----------------------------------------------------------------------------
# Forward wrapper
# ----------------------------------------------------------------------------
def audio_lstm_forward(x, packed):
    """x: (B, NUM_FEATURES) float32 -> (B, NUM_CLASSES) float32."""
    B = x.shape[0]

    # Adaptive batch tiling: big blocks (low per-step overhead), minimal
    # overshoot, and >= 2 tiles for large B so both v7x TCs get work.
    nb = max(1, math.ceil(B / TILE_B_MAX))
    if B > MIN_SPLIT_B:
        nb = max(nb, 2)
    tile_b = _round_up(math.ceil(B / nb), 8)
    b_pad = nb * tile_b

    # Single small pad+cast: (b_pad, 16) bf16, ~32 B/row.  Padded rows/cols are
    # zeros (padded feature rows of w0 are also zero, so the math is exact).
    x_p = jnp.zeros((b_pad, FEAT_PAD), jnp.bfloat16)
    x_p = x_p.at[:B, :NUM_FEATURES].set(x.astype(jnp.bfloat16))

    w0, b0 = packed["w0"], packed["b0"]
    w1, b1 = packed["w1"], packed["b1"]
    wfc, bfc = packed["wfc"], packed["bfc"]

    def weight_spec(shape):            # weights stay VMEM-resident across tiles
        return pl.BlockSpec(shape, lambda i: (0, 0))

    flops = 2 * b_pad * (FEAT_PAD * NUM_GATES * HP
                         + HP * NUM_GATES * HP
                         + HP * CP)
    transcendentals = 2 * b_pad * 4 * HP    # (2 sigmoid + 2 tanh) * HP per layer
    bytes_accessed = (int(x_p.size) * x_p.dtype.itemsize
                      + sum(int(a.size) * a.dtype.itemsize
                            for a in (w0, b0, w1, b1, wfc, bfc))
                      + b_pad * CP * 4)     # output slab

    out_padded = pl.pallas_call(
        audio_lstm_kernel,
        out_shape=jax.ShapeDtypeStruct((b_pad, CP), jnp.float32),
        grid=(nb,),
        in_specs=[
            pl.BlockSpec((tile_b, FEAT_PAD), lambda i: (i, 0)),    # x tile
            weight_spec((FEAT_PAD, NUM_GATES * HP)),               # w0 (resident)
            weight_spec((1, NUM_GATES * HP)),                      # b0
            weight_spec((HP, NUM_GATES * HP)),                     # w1
            weight_spec((1, NUM_GATES * HP)),                      # b1
            weight_spec((HP, CP)),                                 # wfc
            weight_spec((1, CP)),                                  # bfc
        ],
        out_specs=pl.BlockSpec((tile_b, CP), lambda i: (i, 0)),
        compiler_params=pltpu.CompilerParams(
            dimension_semantics=("parallel",)),
        cost_estimate=pl.CostEstimate(flops=flops,
                                      transcendentals=transcendentals,
                                      bytes_accessed=bytes_accessed),
    )(x_p, w0, b0, w1, b1, wfc, bfc)

    return out_padded[:B, :NUM_CLASSES]


# ----------------------------------------------------------------------------
# Parameters / reference / test
# ----------------------------------------------------------------------------
def init_params(key):
    """Deterministic init matching PyTorch LSTM/Linear parameter shapes."""
    ks = jax.random.split(key, 10)
    bound = 1.0 / jnp.sqrt(HIDDEN)
    u = lambda k, shape: jax.random.uniform(k, shape, jnp.float32, -bound, bound)
    return {
        # layer 0
        "w_ih_l0": u(ks[0], (4 * HIDDEN, NUM_FEATURES)),
        "w_hh_l0": u(ks[1], (4 * HIDDEN, HIDDEN)),   # unused: h0 == 0
        "b_ih_l0": u(ks[2], (4 * HIDDEN,)),
        "b_hh_l0": u(ks[3], (4 * HIDDEN,)),
        # layer 1
        "w_ih_l1": u(ks[4], (4 * HIDDEN, HIDDEN)),
        "w_hh_l1": u(ks[5], (4 * HIDDEN, HIDDEN)),   # unused: h0 == 0
        "b_ih_l1": u(ks[6], (4 * HIDDEN,)),
        "b_hh_l1": u(ks[7], (4 * HIDDEN,)),
        # fc
        "w_fc": u(ks[8], (NUM_CLASSES, HIDDEN)),
        "b_fc": u(ks[9], (NUM_CLASSES,)),
    }


def _reference_forward(x, params):
    """Pure-JAX f32 reference of the PyTorch forward (seq_len = 1, zero state)."""
    def cell(xin, w_ih, b_ih, b_hh):
        g = xin @ w_ih.T + b_ih + b_hh
        i, f, gg, o = jnp.split(g, 4, axis=-1)
        c = jax.nn.sigmoid(i) * jnp.tanh(gg)
        return jax.nn.sigmoid(o) * jnp.tanh(c)

    h0 = cell(x, params["w_ih_l0"], params["b_ih_l0"], params["b_hh_l0"])
    h1 = cell(h0, params["w_ih_l1"], params["b_ih_l1"], params["b_hh_l1"])
    return h1 @ params["w_fc"].T + params["b_fc"]


if __name__ == "__main__":
    key = jax.random.PRNGKey(0)
    k_x, k_p = jax.random.split(key)

    B = 8
    x = jax.random.normal(k_x, (B, NUM_FEATURES), dtype=jnp.float32)
    params = init_params(k_p)

    # Pack weights once (outside the per-call path), then run the kernel.
    packed = jax.block_until_ready(pack_params(params))
    out = jax.block_until_ready(audio_lstm_forward(x, packed))

    ref = _reference_forward(x, params)
    assert out.shape == (B, NUM_CLASSES)
    # Tolerance loosened from 1e-5 because matmul operands are bf16 (f32 accum).
    assert jnp.allclose(out, ref, atol=2e-2, rtol=2e-2), "mismatch vs reference"

    print("KERNEL_OK")
</pallas_src>

<mosaic_0001>
module attributes {stable_mosaic.version = 11 : i64} {
  func.func @audio_lstm_kernel(%arg0: i32, %arg1: memref<8x16xbf16, #tpu.memory_space<vmem>>, %arg2: memref<16x384xbf16, #tpu.memory_space<vmem>>, %arg3: memref<1x384xf32, #tpu.memory_space<vmem>>, %arg4: memref<128x384xbf16, #tpu.memory_space<vmem>>, %arg5: memref<1x384xf32, #tpu.memory_space<vmem>>, %arg6: memref<128x8xbf16, #tpu.memory_space<vmem>>, %arg7: memref<1x8xf32, #tpu.memory_space<vmem>>, %arg8: memref<8x8xf32, #tpu.memory_space<vmem>>) attributes {dimension_semantics = [#tpu.dimension_semantics<parallel>], iteration_bounds = array<i64: 1>, scalar_prefetch = 0 : i64, scratch_operands = 0 : i64, tpu.core_type = #tpu.core_type<tc>, window_params = [{transform_indices = @transform_0, window_bounds = array<i64: 8, 16>}, {pipeline_mode = #tpu.pipeline_mode<synchronous>, transform_indices = @transform_1, window_bounds = array<i64: 16, 384>}, {pipeline_mode = #tpu.pipeline_mode<synchronous>, transform_indices = @transform_2, window_bounds = array<i64: 1, 384>}, {pipeline_mode = #tpu.pipeline_mode<synchronous>, transform_indices = @transform_3, window_bounds = array<i64: 128, 384>}, {pipeline_mode = #tpu.pipeline_mode<synchronous>, transform_indices = @transform_4, window_bounds = array<i64: 1, 384>}, {pipeline_mode = #tpu.pipeline_mode<synchronous>, transform_indices = @transform_5, window_bounds = array<i64: 128, 8>}, {pipeline_mode = #tpu.pipeline_mode<synchronous>, transform_indices = @transform_6, window_bounds = array<i64: 1, 8>}, {transform_indices = @transform_7, window_bounds = array<i64: 8, 8>}]} {
    %c0 = arith.constant 0 : index
    %c0_0 = arith.constant 0 : index
    %0 = vector.load %arg1[%c0, %c0_0] : memref<8x16xbf16, #tpu.memory_space<vmem>>, vector<8x16xbf16>
    %c0_1 = arith.constant 0 : index
    %c0_2 = arith.constant 0 : index
    %1 = vector.load %arg2[%c0_1, %c0_2] : memref<16x384xbf16, #tpu.memory_space<vmem>>, vector<16x384xbf16>
    %cst = arith.constant dense<0.000000e+00> : vector<8x384xf32>
    %2 = tpu.matmul %0, %1, %cst {dimension_numbers = #tpu.dot_dimension_numbers<[1], [0], [0], [1], [0, 0, 1, 1], [], []>} : vector<8x16xbf16>, vector<16x384xbf16>, vector<8x384xf32> -> vector<8x384xf32>
    %c0_3 = arith.constant 0 : index
    %c0_4 = arith.constant 0 : index
    %3 = vector.load %arg3[%c0_3, %c0_4] : memref<1x384xf32, #tpu.memory_space<vmem>>, vector<1x384xf32>
    %4 = vector.broadcast %3 : vector<1x384xf32> to vector<8x384xf32>
    %5 = arith.addf %2, %4 : vector<8x384xf32>
    %6 = vector.extract_strided_slice %5 {offsets = [0, 0], sizes = [8, 128], strides = [1, 1]} : vector<8x384xf32> to vector<8x128xf32>
    %7 = arith.negf %6 : vector<8x128xf32>
    %8 = math.exp %7 : vector<8x128xf32>
    %cst_5 = arith.constant 1.000000e+00 : f32
    %9 = vector.broadcast %cst_5 : f32 to vector<8x128xf32>
    %10 = arith.addf %9, %8 : vector<8x128xf32>
    %11 = arith.divf %9, %10 : vector<8x128xf32>
    %12 = vector.extract_strided_slice %5 {offsets = [0, 128], sizes = [8, 128], strides = [1, 1]} : vector<8x384xf32> to vector<8x128xf32>
    %13 = math.tanh %12 : vector<8x128xf32>
    %14 = vector.extract_strided_slice %5 {offsets = [0, 256], sizes = [8, 128], strides = [1, 1]} : vector<8x384xf32> to vector<8x128xf32>
    %15 = arith.negf %14 : vector<8x128xf32>
    %16 = math.exp %15 : vector<8x128xf32>
    %cst_6 = arith.constant 1.000000e+00 : f32
    %17 = vector.broadcast %cst_6 : f32 to vector<8x128xf32>
    %18 = arith.addf %17, %16 : vector<8x128xf32>
    %19 = arith.divf %17, %18 : vector<8x128xf32>
    %20 = arith.mulf %11, %13 : vector<8x128xf32>
    %21 = math.tanh %20 : vector<8x128xf32>
    %22 = arith.mulf %19, %21 : vector<8x128xf32>
    %23 = arith.truncf %22 : vector<8x128xf32> to vector<8x128xbf16>
    %c0_7 = arith.constant 0 : index
    %c0_8 = arith.constant 0 : index
    %24 = vector.load %arg4[%c0_7, %c0_8] : memref<128x384xbf16, #tpu.memory_space<vmem>>, vector<128x384xbf16>
    %cst_9 = arith.constant dense<0.000000e+00> : vector<8x384xf32>
    %25 = tpu.matmul %23, %24, %cst_9 {dimension_numbers = #tpu.dot_dimension_numbers<[1], [0], [0], [1], [0, 0, 1, 1], [], []>} : vector<8x128xbf16>, vector<128x384xbf16>, vector<8x384xf32> -> vector<8x384xf32>
    %c0_10 = arith.constant 0 : index
    %c0_11 = arith.constant 0 : index
    %26 = vector.load %arg5[%c0_10, %c0_11] : memref<1x384xf32, #tpu.memory_space<vmem>>, vector<1x384xf32>
    %27 = vector.broadcast %26 : vector<1x384xf32> to vector<8x384xf32>
    %28 = arith.addf %25, %27 : vector<8x384xf32>
    %29 = vector.extract_strided_slice %28 {offsets = [0, 0], sizes = [8, 128], strides = [1, 1]} : vector<8x384xf32> to vector<8x128xf32>
    %30 = arith.negf %29 : vector<8x128xf32>
    %31 = math.exp %30 : vector<8x128xf32>
    %cst_12 = arith.constant 1.000000e+00 : f32
    %32 = vector.broadcast %cst_12 : f32 to vector<8x128xf32>
    %33 = arith.addf %32, %31 : vector<8x128xf32>
    %34 = arith.divf %32, %33 : vector<8x128xf32>
    %35 = vector.extract_strided_slice %28 {offsets = [0, 128], sizes = [8, 128], strides = [1, 1]} : vector<8x384xf32> to vector<8x128xf32>
    %36 = math.tanh %35 : vector<8x128xf32>
    %37 = vector.extract_strided_slice %28 {offsets = [0, 256], sizes = [8, 128], strides = [1, 1]} : vector<8x384xf32> to vector<8x128xf32>
    %38 = arith.negf %37 : vector<8x128xf32>
    %39 = math.exp %38 : vector<8x128xf32>
    %cst_13 = arith.constant 1.000000e+00 : f32
    %40 = vector.broadcast %cst_13 : f32 to vector<8x128xf32>
    %41 = arith.addf %40, %39 : vector<8x128xf32>
    %42 = arith.divf %40, %41 : vector<8x128xf32>
    %43 = arith.mulf %34, %36 : vector<8x128xf32>
    %44 = math.tanh %43 : vector<8x128xf32>
    %45 = arith.mulf %42, %44 : vector<8x128xf32>
    %46 = arith.truncf %45 : vector<8x128xf32> to vector<8x128xbf16>
    %c0_14 = arith.constant 0 : index
    %c0_15 = arith.constant 0 : index
    %47 = vector.load %arg6[%c0_14, %c0_15] : memref<128x8xbf16, #tpu.memory_space<vmem>>, vector<128x8xbf16>
    %cst_16 = arith.constant dense<0.000000e+00> : vector<8x8xf32>
    %48 = tpu.matmul %46, %47, %cst_16 {dimension_numbers = #tpu.dot_dimension_numbers<[1], [0], [0], [1], [0, 0, 1, 1], [], []>} : vector<8x128xbf16>, vector<128x8xbf16>, vector<8x8xf32> -> vector<8x8xf32>
    %c0_17 = arith.constant 0 : index
    %c0_18 = arith.constant 0 : index
    %49 = vector.load %arg7[%c0_17, %c0_18] : memref<1x8xf32, #tpu.memory_space<vmem>>, vector<1x8xf32>
    %50 = vector.broadcast %49 : vector<1x8xf32> to vector<8x8xf32>
    %51 = arith.addf %48, %50 : vector<8x8xf32>
    %c0_19 = arith.constant 0 : index
    %c0_20 = arith.constant 0 : index
    %52 = vector.load %arg8[%c0_19, %c0_20] : memref<8x8xf32, #tpu.memory_space<vmem>>, vector<8x8xf32>
    tpu.vector_store %arg8[%c0_19, %c0_20], %51 {strides = array<i32>} : memref<8x8xf32, #tpu.memory_space<vmem>>, vector<8x8xf32>,
    return
  }
  func.func @transform_0(%arg0: i32) -> (i32, i32) {
    %c0_i32 = arith.constant 0 : i32
    %c0_i32_0 = arith.constant 0 : i32
    return %arg0, %c0_i32 : i32, i32
  }
  func.func @transform_1(%arg0: i32) -> (i32, i32) {
    %c0_i32 = arith.constant 0 : i32
    %c0_i32_0 = arith.constant 0 : i32
    %c0_i32_1 = arith.constant 0 : i32
    return %c0_i32, %c0_i32_0 : i32, i32
  }
  func.func @transform_2(%arg0: i32) -> (i32, i32) {
    %c0_i32 = arith.constant 0 : i32
    %c0_i32_0 = arith.constant 0 : i32
    %c0_i32_1 = arith.constant 0 : i32
    return %c0_i32, %c0_i32_0 : i32, i32
  }
  func.func @transform_3(%arg0: i32) -> (i32, i32) {
    %c0_i32 = arith.constant 0 : i32
    %c0_i32_0 = arith.constant 0 : i32
    %c0_i32_1 = arith.constant 0 : i32
    return %c0_i32, %c0_i32_0 : i32, i32
  }
  func.func @transform_4(%arg0: i32) -> (i32, i32) {
    %c0_i32 = arith.constant 0 : i32
    %c0_i32_0 = arith.constant 0 : i32
    %c0_i32_1 = arith.constant 0 : i32
    return %c0_i32, %c0_i32_0 : i32, i32
  }
  func.func @transform_5(%arg0: i32) -> (i32, i32) {
    %c0_i32 = arith.constant 0 : i32
    %c0_i32_0 = arith.constant 0 : i32
    %c0_i32_1 = arith.constant 0 : i32
    return %c0_i32, %c0_i32_0 : i32, i32
  }
  func.func @transform_6(%arg0: i32) -> (i32, i32) {
    %c0_i32 = arith.constant 0 : i32
    %c0_i32_0 = arith.constant 0 : i32
    %c0_i32_1 = arith.constant 0 : i32
    return %c0_i32, %c0_i32_0 : i32, i32
  }
  func.func @transform_7(%arg0: i32) -> (i32, i32) {
    %c0_i32 = arith.constant 0 : i32
    %c0_i32_0 = arith.constant 0 : i32
    return %arg0, %c0_i32 : i32, i32
  }
}

</mosaic_0001>

<llo_original>
// kernel: tpu_custom_call.1
$region0: #{tpu_custom_call.1}
  #allocation0 [shape = 'u32[]', space=smem, size = 0x4, offset = 0x4, fixed_abs, tag = 'smem constant byte address 0x4 - core index']
  #allocation1 [shape = 'u32[144,128]{1,0:T(1,128)}', space=vmem, size = 0x12000, scoped, tag = 'internal scratch']
  %s0 = inlined_call_operand.vmem [shape: bf16[8,16], index: 0, kind: input, shape index: {}]
  %s1 = inlined_call_operand.vmem [shape: bf16[16,384], index: 1, kind: input, shape index: {}]
  %s2 = inlined_call_operand.vmem [shape: f32[1,384], index: 2, kind: input, shape index: {}]
  %s3 = inlined_call_operand.hbm [shape: bf16[128,384], index: 3, kind: input, shape index: {}]
  %s4 = inlined_call_operand.vmem [shape: f32[1,384], index: 4, kind: input, shape index: {}]
  %s5 = inlined_call_operand.vmem [shape: bf16[128,8], index: 5, kind: input, shape index: {}]
  %s6 = inlined_call_operand.vmem [shape: f32[1,8], index: 6, kind: input, shape index: {}]
  %s7 = inlined_call_operand.hbm [shape: f32[8,8], index: 7, kind: output, shape index: {}]
  %s8 = sld [smem:[#allocation0]]
  $region42: #{tpu_custom_call.1} parent=0
    _
  %s10 = ssub.s32 1, %s8
  %s11 = scalar_select 0, %s10, %s8
  $region1: #{tpu_custom_call.1} parent=0
    #allocation2 [shape = 'u8[98304]{0}', space=vmem, size = 0x18000, scoped, tag = 'input window, operand 3, single buffered']
    #allocation3 [shape = 's32[1]{0}', space=sflag, size = 0x4, scoped, tag = 'scoped memory for tpu_custom_call.1']
    #allocation4 [shape = 's32[1]{0}', space=sflag, size = 0x4, scoped, tag = 'scoped memory for tpu_custom_call.1']
    #allocation5 [shape = 'u8[4096]{0}', space=vmem, size = 0x1000, scoped, tag = 'output window, operand 0, single buffered']
    %12 = vsyncpa [#allocation3], 0
    %13 = vsyncpa [#allocation4], 0
    // Predicated region
    $region2: #{tpu_custom_call.1} parent=1 // pred_check
      _
    $region3: #{tpu_custom_call.1} parent=1 // pred_check_branch
      %15 = sbr.rel (0) target = $region5
    $region4: #{tpu_custom_call.1} parent=1 // pred_region
      _
    $region5: #{tpu_custom_call.1} parent=1 // pred_fallthru
      _
    // Predicated region
    $region6: #{tpu_custom_call.1} parent=1 // pred_check
      _
    $region7: #{tpu_custom_call.1} parent=1 // pred_check_branch
      %17 = sbr.rel (0) target = $region9
    $region8: #{tpu_custom_call.1} parent=1 // pred_region
      _
    $region9: #{tpu_custom_call.1} parent=1 // pred_fallthru
      _
    // Predicated region
    $region10: #{tpu_custom_call.1} parent=1 // pred_check
      _
    $region11: #{tpu_custom_call.1} parent=1 // pred_check_branch
      %19 = sbr.rel (0) target = $region13
    $region12: #{tpu_custom_call.1} parent=1 // pred_region
      _
    $region13: #{tpu_custom_call.1} parent=1 // pred_fallthru
      _
    // Predicated region
    $region14: #{tpu_custom_call.1} parent=1 // pred_check
      _
    $region15: #{tpu_custom_call.1} parent=1 // pred_check_branch
      %21 = sbr.rel (0) target = $region17
    $region16: #{tpu_custom_call.1} parent=1 // pred_region
      %s23 = ssub.s32 3072, 3072
      %24 = vsyncadd [#allocation3], %s23
      %s25 = sshll.u32 [#allocation2], 4
      %s26 = int_to_ptr.vmem [resolvable:$true] %s25
      %31 = dma.hbm_to_vmem [thread:$0]  %s3, 3072, %s26, [#allocation3], 192, 192, 12
    $region17: #{tpu_custom_call.1} parent=1 // pred_fallthru
      _
    // Predicated region
    $region18: #{tpu_custom_call.1} parent=1 // pred_check
      _
    $region19: #{tpu_custom_call.1} parent=1 // pred_check_branch
      %33 = sbr.rel (0) target = $region21
    $region20: #{tpu_custom_call.1} parent=1 // pred_region
      _
    $region21: #{tpu_custom_call.1} parent=1 // pred_fallthru
      _
    // Predicated region
    $region22: #{tpu_custom_call.1} parent=1 // pred_check
      _
    $region23: #{tpu_custom_call.1} parent=1 // pred_check_branch
      %35 = sbr.rel (0) target = $region25
    $region24: #{tpu_custom_call.1} parent=1 // pred_region
      _
    $region25: #{tpu_custom_call.1} parent=1 // pred_fallthru
      _
    // Predicated region
    $region26: #{tpu_custom_call.1} parent=1 // pred_check
      _
    $region27: #{tpu_custom_call.1} parent=1 // pred_check_branch
      %37 = sbr.rel (0) target = $region29
    $region28: #{tpu_custom_call.1} parent=1 // pred_region
      _
    $region29: #{tpu_custom_call.1} parent=1 // pred_fallthru
      _
    // Predicated region
    $region30: #{tpu_custom_call.1} parent=1 // pred_check
      _
    $region31: #{tpu_custom_call.1} parent=1 // pred_check_branch
      %39 = sbr.rel (0) target = $region33
    $region32: #{tpu_custom_call.1} parent=1 // pred_region
      %40 = dma.done [#allocation3], 3072
    $region33: #{tpu_custom_call.1} parent=1 // pred_fallthru
      _
    %v42 = vld [vmem:[%s0] sm:$0xf]
    %v43 = vld [vmem:[%s1] sm:$0xff]
    %v44 = vld [vmem:[%s1 + $0x8] sm:$0xf]
    %v45 = vld [vmem:[%s1 + $0xc] sm:$0xff]
    %v46 = vld [vmem:[%s1 + $0x14] sm:$0xf]
    %v47 = vld [vmem:[%s2] sm:$0x7]
    %v49 = vlaneseq
    %v50 = vshrl.u32 %v49, 7
    %v51 = vsub.s32 0, %v50
    %v52 = vrot.slane %v47, %v51
    %v53 = vlaneseq
    %v54 = vshrl.u32 %v53, 7
    %v55 = vsub.s32 1, %v54
    %v56 = vrot.slane %v47, %v55
    %v57 = vlaneseq
    %v58 = vshrl.u32 %v57, 7
    %v59 = vsub.s32 2, %v58
    %v60 = vrot.slane %v47, %v59
    %v68 = vunpack.c.l.b16 %v43
    %v69 = vunpack.c.h.b16 %v43
    %v70 = vunpack.c.l.b16 %v44
    %v71 = vunpack.c.l.b16 %v45
    %v72 = vunpack.c.h.b16 %v45
    %v73 = vunpack.c.l.b16 %v46
    %v74 = vpack.c.b16 %v71, %v68
    %v75 = vpack.c.b16 %v72, %v69
    %v76 = vpack.c.b16 %v73, %v70
    %vm80 = vcmask 130048
    %v82 = vsel %vm80, %v42, 0
    %84 = vmatprep.subr.bf16.mxu0 %v75
    %85 = vmatpush1.bf16.msra.mxu0 %v74
    %86 = vmatprep.subr.bf16.mxu0 0
    %87 = vmatpush1.bf16.msra.mxu0 0
    %88 = vmatprep.subr.bf16.mxu0 0
    %89 = vmatpush1.bf16.msra.mxu0 0
    %90 = vmatprep.subr.bf16.mxu0 0
    %91 = vmatpush1.bf16.msra.mxu0 0
    %92 = vmatprep.subr.bf16.mxu0 0
    %93 = vmatpush1.bf16.msra.mxu0 0
    %94 = vmatprep.subr.bf16.mxu0 0
    %95 = vmatpush1.bf16.msra.mxu0 0
    %96 = vmatprep.subr.bf16.mxu0 0
    %97 = vmatpush1.bf16.msra.mxu0 0
    %98 = vmatprep.subr.bf16.mxu0 0
    %99 = vmatpush1.bf16.msra.mxu0 0
    %100 = vmatprep.subr.bf16.mxu0 0
    %101 = vmatpush1.bf16.msra.mxu0 0
    %102 = vmatprep.subr.bf16.mxu0 0
    %103 = vmatpush1.bf16.msra.mxu0 0
    %104 = vmatprep.subr.bf16.mxu0 0
    %105 = vmatpush1.bf16.msra.mxu0 0
    %106 = vmatprep.subr.bf16.mxu0 0
    %107 = vmatpush1.bf16.msra.mxu0 0
    %108 = vmatprep.subr.bf16.mxu0 0
    %109 = vmatpush1.bf16.msra.mxu0 0
    %110 = vmatprep.subr.bf16.mxu0 0
    %111 = vmatpush1.bf16.msra.mxu0 0
    %112 = vmatprep.subr.bf16.mxu0 0
    %113 = vmatpush1.bf16.msra.mxu0 0
    %114 = vmatprep.subr.bf16.mxu0 0
    %115 = vmatpush1.bf16.msra.mxu0 0
    %116 = vmatprep.mubr.bf16.mxu0 0
    %117 = vmatmul.mubr.bf16.gmra.mrb[0].mxu0 %v82
    %v118 = vpop.f32.mrb[0].mxu0
    %v119 = vadd.f32 %v52, %v118
    %v120 = vpop.f32.mrb[0].mxu0
    %v121 = vadd.f32 %v56, %v120
    %v122 = vpop.f32.mrb[0].mxu0
    %v123 = vpop.f32.mrb[0].mxu0
    %124 = vdwg.mxu0
    %125 = vmatprep.subr.bf16.mxu0 0
    %126 = vmatpush1.bf16.msra.mxu0 %v76
    %127 = vmatprep.subr.bf16.mxu0 0
    %128 = vmatpush1.bf16.msra.mxu0 0
    %129 = vmatprep.subr.bf16.mxu0 0
    %130 = vmatpush1.bf16.msra.mxu0 0
    %131 = vmatprep.subr.bf16.mxu0 0
    %132 = vmatpush1.bf16.msra.mxu0 0
    %133 = vmatprep.subr.bf16.mxu0 0
    %134 = vmatpush1.bf16.msra.mxu0 0
    %135 = vmatprep.subr.bf16.mxu0 0
    %136 = vmatpush1.bf16.msra.mxu0 0
    %137 = vmatprep.subr.bf16.mxu0 0
    %138 = vmatpush1.bf16.msra.mxu0 0
    %139 = vmatprep.subr.bf16.mxu0 0
    %140 = vmatpush1.bf16.msra.mxu0 0
    %141 = vmatprep.subr.bf16.mxu0 0
    %142 = vmatpush1.bf16.msra.mxu0 0
    %143 = vmatprep.subr.bf16.mxu0 0
    %144 = vmatpush1.bf16.msra.mxu0 0
    %145 = vmatprep.subr.bf16.mxu0 0
    %146 = vmatpush1.bf16.msra.mxu0 0
    %147 = vmatprep.subr.bf16.mxu0 0
    %148 = vmatpush1.bf16.msra.mxu0 0
    %149 = vmatprep.subr.bf16.mxu0 0
    %150 = vmatpush1.bf16.msra.mxu0 0
    %151 = vmatprep.subr.bf16.mxu0 0
    %152 = vmatpush1.bf16.msra.mxu0 0
    %153 = vmatprep.subr.bf16.mxu0 0
    %154 = vmatpush1.bf16.msra.mxu0 0
    %155 = vmatprep.subr.bf16.mxu0 0
    %156 = vmatpush1.bf16.msra.mxu0 0
    %157 = vmatprep.mubr.bf16.mxu0 0
    %158 = vmatmul.mubr.bf16.gmra.mrb[0].mxu0 %v82
    %v159 = vpop.f32.mrb[0].mxu0
    %v160 = vadd.f32 %v60, %v159
    %v161 = vpop.f32.mrb[0].mxu0
    %v162 = vpop.f32.mrb[0].mxu0
    %v163 = vpop.f32.mrb[0].mxu0
    %164 = vdwg.mxu0
    %v165 = vxor.u32 %v119, 2147483648
    %v166 = vmul.f32 %v165, 1.442695
    %v167 = vpow.pop %v166
    %v168 = vadd.f32 %v167, 1.0
    %v169 = vrcp.pop %v168
    %v170 = vmul.f32 1.0, %v169
    %v171 = vtanh.pop %v121
    %v172 = vxor.u32 %v160, 2147483648
    %v173 = vmul.f32 %v172, 1.442695
    %v174 = vpow.pop %v173
    %v175 = vadd.f32 %v174, 1.0
    %v176 = vrcp.pop %v175
    %v177 = vmul.f32 1.0, %v176
    %v178 = vmul.f32 %v170, %v171
    %v179 = vtanh.pop %v178
    %v180 = vmul.f32 %v177, %v179
    %v181 = vpack.c.bf16 %v180, %v180
    %v182 = vld [vmem:[#allocation2] sm:$0xff]
    %v183 = vld [vmem:[#allocation2 + $0x8] sm:$0xf]
    %v184 = vld [vmem:[#allocation2 + $0xc] sm:$0xff]
    %v185 = vld [vmem:[#allocation2 + $0x14] sm:$0xf]
    %v186 = vld [vmem:[#allocation2 + $0x18] sm:$0xff]
    %v187 = vld [vmem:[#allocation2 + $0x20] sm:$0xf]
    %v188 = vld [vmem:[#allocation2 + $0x24] sm:$0xff]
    %v189 = vld [vmem:[#allocation2 + $0x2c] sm:$0xf]
    %v190 = vld [vmem:[#allocation2 + $0x30] sm:$0xff]
    %v191 = vld [vmem:[#allocation2 + $0x38] sm:$0xf]
    %v192 = vld [vmem:[#allocation2 + $0x3c] sm:$0xff]
    %v193 = vld [vmem:[#allocation2 + $0x44] sm:$0xf]
    %v194 = vld [vmem:[#allocation2 + $0x48] sm:$0xff]
    %v195 = vld [vmem:[#allocation2 + $0x50] sm:$0xf]
    %v196 = vld [vmem:[#allocation2 + $0x54] sm:$0xff]
    %v197 = vld [vmem:[#allocation2 + $0x5c] sm:$0xf]
    %v198 = vld [vmem:[#allocation2 + $0x60] sm:$0xff]
    %v199 = vld [vmem:[#allocation2 + $0x68] sm:$0xf]
    %v200 = vld [vmem:[#allocation2 + $0x6c] sm:$0xff]
    %v201 = vld [vmem:[#allocation2 + $0x74] sm:$0xf]
    %v202 = vld [vmem:[#allocation2 + $0x78] sm:$0xff]
    %v203 = vld [vmem:[#allocation2 + $0x80] sm:$0xf]
    %v204 = vld [vmem:[#allocation2 + $0x84] sm:$0xff]
    %v205 = vld [vmem:[#allocation2 + $0x8c] sm:$0xf]
    %v206 = vld [vmem:[#allocation2 + $0x90] sm:$0xff]
    %v207 = vld [vmem:[#allocation2 + $0x98] sm:$0xf]
    %v208 = vld [vmem:[#allocation2 + $0x9c] sm:$0xff]
    %v209 = vld [vmem:[#allocation2 + $0xa4] sm:$0xf]
    %v210 = vld [vmem:[#allocation2 + $0xa8] sm:$0xff]
    %v211 = vld [vmem:[#allocation2 + $0xb0] sm:$0xf]
    %v212 = vld [vmem:[#allocation2 + $0xb4] sm:$0xff]
    %v213 = vld [vmem:[#allocation2 + $0xbc] sm:$0xf]
    %v214 = vld [vmem:[%s4] sm:$0x7]
    %v216 = vlaneseq
    %v217 = vshrl.u32 %v216, 7
    %v218 = vsub.s32 0, %v217
    %v219 = vrot.slane %v214, %v218
    %v220 = vlaneseq
    %v221 = vshrl.u32 %v220, 7
    %v222 = vsub.s32 1, %v221
    %v223 = vrot.slane %v214, %v222
    %v224 = vlaneseq
    %v225 = vshrl.u32 %v224, 7
    %v226 = vsub.s32 2, %v225
    %v227 = vrot.slane %v214, %v226
    %v263 = vunpack.c.l.b16 %v182
    %v264 = vunpack.c.h.b16 %v182
    %v265 = vunpack.c.l.b16 %v183
    %v266 = vunpack.c.l.b16 %v184
    %v267 = vunpack.c.h.b16 %v184
    %v268 = vunpack.c.l.b16 %v185
    %v269 = vunpack.c.l.b16 %v186
    %v270 = vunpack.c.h.b16 %v186
    %v271 = vunpack.c.l.b16 %v187
    %v272 = vunpack.c.l.b16 %v188
    %v273 = vunpack.c.h.b16 %v188
    %v274 = vunpack.c.l.b16 %v189
    %v275 = vunpack.c.l.b16 %v190
    %v276 = vunpack.c.h.b16 %v190
    %v277 = vunpack.c.l.b16 %v191
    %v278 = vunpack.c.l.b16 %v192
    %v279 = vunpack.c.h.b16 %v192
    %v280 = vunpack.c.l.b16 %v193
    %v281 = vunpack.c.l.b16 %v194
    %v282 = vunpack.c.h.b16 %v194
    %v283 = vunpack.c.l.b16 %v195
    %v284 = vunpack.c.l.b16 %v196
    %v285 = vunpack.c.h.b16 %v196
    %v286 = vunpack.c.l.b16 %v197
    %v287 = vunpack.c.l.b16 %v198
    %v288 = vunpack.c.h.b16 %v198
    %v289 = vunpack.c.l.b16 %v199
    %v290 = vunpack.c.l.b16 %v200
    %v291 = vunpack.c.h.b16 %v200
    %v292 = vunpack.c.l.b16 %v201
    %v293 = vunpack.c.l.b16 %v202
    %v294 = vunpack.c.h.b16 %v202
    %v295 = vunpack.c.l.b16 %v203
    %v296 = vunpack.c.l.b16 %v204
    %v297 = vunpack.c.h.b16 %v204
    %v298 = vunpack.c.l.b16 %v205
    %v299 = vunpack.c.l.b16 %v206
    %v300 = vunpack.c.h.b16 %v206
    %v301 = vunpack.c.l.b16 %v207
    %v302 = vunpack.c.l.b16 %v208
    %v303 = vunpack.c.h.b16 %v208
    %v304 = vunpack.c.l.b16 %v209
    %v305 = vunpack.c.l.b16 %v210
    %v306 = vunpack.c.h.b16 %v210
    %v307 = vunpack.c.l.b16 %v211
    %v308 = vunpack.c.l.b16 %v212
    %v309 = vunpack.c.h.b16 %v212
    %v310 = vunpack.c.l.b16 %v213
    %v311 = vpack.c.b16 %v266, %v263
    %v312 = vpack.c.b16 %v267, %v264
    %v313 = vpack.c.b16 %v268, %v265
    %v314 = vpack.c.b16 %v272, %v269
    %v315 = vpack.c.b16 %v273, %v270
    %v316 = vpack.c.b16 %v274, %v271
    %v317 = vpack.c.b16 %v278, %v275
    %v318 = vpack.c.b16 %v279, %v276
    %v319 = vpack.c.b16 %v280, %v277
    %v320 = vpack.c.b16 %v284, %v281
    %v321 = vpack.c.b16 %v285, %v282
    %v322 = vpack.c.b16 %v286, %v283
    %v323 = vpack.c.b16 %v290, %v287
    %v324 = vpack.c.b16 %v291, %v288
    %v325 = vpack.c.b16 %v292, %v289
    %v326 = vpack.c.b16 %v296, %v293
    %v327 = vpack.c.b16 %v297, %v294
    %v328 = vpack.c.b16 %v298, %v295
    %v329 = vpack.c.b16 %v302, %v299
    %v330 = vpack.c.b16 %v303, %v300
    %v331 = vpack.c.b16 %v304, %v301
    %v332 = vpack.c.b16 %v308, %v305
    %v333 = vpack.c.b16 %v309, %v306
    %v334 = vpack.c.b16 %v310, %v307
    %359 = vmatprep.subr.bf16.mxu0 %v312
    %360 = vmatpush1.bf16.msra.mxu0 %v311
    %361 = vmatprep.subr.bf16.mxu0 %v315
    %362 = vmatpush1.bf16.msra.mxu0 %v314
    %363 = vmatprep.subr.bf16.mxu0 %v318
    %364 = vmatpush1.bf16.msra.mxu0 %v317
    %365 = vmatprep.subr.bf16.mxu0 %v321
    %366 = vmatpush1.bf16.msra.mxu0 %v320
    %367 = vmatprep.subr.bf16.mxu0 %v324
    %368 = vmatpush1.bf16.msra.mxu0 %v323
    %369 = vmatprep.subr.bf16.mxu0 %v327
    %370 = vmatpush1.bf16.msra.mxu0 %v326
    %371 = vmatprep.subr.bf16.mxu0 %v330
    %372 = vmatpush1.bf16.msra.mxu0 %v329
    %373 = vmatprep.subr.bf16.mxu0 %v333
    %374 = vmatpush1.bf16.msra.mxu0 %v332
    %375 = vmatprep.subr.bf16.mxu0 0
    %376 = vmatpush1.bf16.msra.mxu0 0
    %377 = vmatprep.subr.bf16.mxu0 0
    %378 = vmatpush1.bf16.msra.mxu0 0
    %379 = vmatprep.subr.bf16.mxu0 0
    %380 = vmatpush1.bf16.msra.mxu0 0
    %381 = vmatprep.subr.bf16.mxu0 0
    %382 = vmatpush1.bf16.msra.mxu0 0
    %383 = vmatprep.subr.bf16.mxu0 0
    %384 = vmatpush1.bf16.msra.mxu0 0
    %385 = vmatprep.subr.bf16.mxu0 0
    %386 = vmatpush1.bf16.msra.mxu0 0
    %387 = vmatprep.subr.bf16.mxu0 0
    %388 = vmatpush1.bf16.msra.mxu0 0
    %389 = vmatprep.subr.bf16.mxu0 0
    %390 = vmatpush1.bf16.msra.mxu0 0
    %391 = vmatprep.mubr.bf16.mxu0 0
    %392 = vmatmul.mubr.bf16.gmra.mrb[0].mxu0 %v181
    %v393 = vpop.f32.mrb[0].mxu0
    %v394 = vadd.f32 %v219, %v393
    %v395 = vpop.f32.mrb[0].mxu0
    %v396 = vadd.f32 %v223, %v395
    %v397 = vpop.f32.mrb[0].mxu0
    %v398 = vpop.f32.mrb[0].mxu0
    %399 = vdwg.mxu0
    %400 = vmatprep.subr.bf16.mxu0 0
    %401 = vmatpush1.bf16.msra.mxu0 %v313
    %402 = vmatprep.subr.bf16.mxu0 0
    %403 = vmatpush1.bf16.msra.mxu0 %v316
    %404 = vmatprep.subr.bf16.mxu0 0
    %405 = vmatpush1.bf16.msra.mxu0 %v319
    %406 = vmatprep.subr.bf16.mxu0 0
    %407 = vmatpush1.bf16.msra.mxu0 %v322
    %408 = vmatprep.subr.bf16.mxu0 0
    %409 = vmatpush1.bf16.msra.mxu0 %v325
    %410 = vmatprep.subr.bf16.mxu0 0
    %411 = vmatpush1.bf16.msra.mxu0 %v328
    %412 = vmatprep.subr.bf16.mxu0 0
    %413 = vmatpush1.bf16.msra.mxu0 %v331
    %414 = vmatprep.subr.bf16.mxu0 0
    %415 = vmatpush1.bf16.msra.mxu0 %v334
    %416 = vmatprep.subr.bf16.mxu0 0
    %417 = vmatpush1.bf16.msra.mxu0 0
    %418 = vmatprep.subr.bf16.mxu0 0
    %419 = vmatpush1.bf16.msra.mxu0 0
    %420 = vmatprep.subr.bf16.mxu0 0
    %421 = vmatpush1.bf16.msra.mxu0 0
    %422 = vmatprep.subr.bf16.mxu0 0
    %423 = vmatpush1.bf16.msra.mxu0 0
    %424 = vmatprep.subr.bf16.mxu0 0
    %425 = vmatpush1.bf16.msra.mxu0 0
    %426 = vmatprep.subr.bf16.mxu0 0
    %427 = vmatpush1.bf16.msra.mxu0 0
    %428 = vmatprep.subr.bf16.mxu0 0
    %429 = vmatpush1.bf16.msra.mxu0 0
    %430 = vmatprep.subr.bf16.mxu0 0
    %431 = vmatpush1.bf16.msra.mxu0 0
    %432 = vmatprep.mubr.bf16.mxu0 0
    %433 = vmatmul.mubr.bf16.gmra.mrb[0].mxu0 %v181
    %v434 = vpop.f32.mrb[0].mxu0
    %v435 = vadd.f32 %v227, %v434
    %v436 = vpop.f32.mrb[0].mxu0
    %v437 = vpop.f32.mrb[0].mxu0
    %v438 = vpop.f32.mrb[0].mxu0
    %439 = vdwg.mxu0
    %v440 = vxor.u32 %v394, 2147483648
    %v441 = vmul.f32 %v440, 1.442695
    %v442 = vpow.pop %v441
    %v443 = vadd.f32 %v442, 1.0
    %v444 = vrcp.pop %v443
    %v445 = vmul.f32 1.0, %v444
    %v446 = vtanh.pop %v396
    %v447 = vxor.u32 %v435, 2147483648
    %v448 = vmul.f32 %v447, 1.442695
    %v449 = vpow.pop %v448
    %v450 = vadd.f32 %v449, 1.0
    %v451 = vrcp.pop %v450
    %v452 = vmul.f32 1.0, %v451
    %v453 = vmul.f32 %v445, %v446
    %v454 = vtanh.pop %v453
    %v455 = vmul.f32 %v452, %v454
    %v456 = vpack.c.bf16 %v455, %v455
    %v457 = vld [vmem:[%s5] sm:$0xf]
    %v458 = vld [vmem:[%s5 + $0x4] sm:$0xf]
    %v459 = vld [vmem:[%s5 + $0x8] sm:$0xf]
    %v460 = vld [vmem:[%s5 + $0xc] sm:$0xf]
    %v461 = vld [vmem:[%s5 + $0x10] sm:$0xf]
    %v462 = vld [vmem:[%s5 + $0x14] sm:$0xf]
    %v463 = vld [vmem:[%s5 + $0x18] sm:$0xf]
    %v464 = vld [vmem:[%s5 + $0x1c] sm:$0xf]
    %v465 = vld [vmem:[%s5 + $0x20] sm:$0xf]
    %v466 = vld [vmem:[%s5 + $0x24] sm:$0xf]
    %v467 = vld [vmem:[%s5 + $0x28] sm:$0xf]
    %v468 = vld [vmem:[%s5 + $0x2c] sm:$0xf]
    %v469 = vld [vmem:[%s5 + $0x30] sm:$0xf]
    %v470 = vld [vmem:[%s5 + $0x34] sm:$0xf]
    %v471 = vld [vmem:[%s5 + $0x38] sm:$0xf]
    %v472 = vld [vmem:[%s5 + $0x3c] sm:$0xf]
    %v473 = vld [vmem:[%s6] sm:$0x1]
    %v475 = vlaneseq
    %v476 = vshrl.u32 %v475, 7
    %v477 = vsub.s32 0, %v476
    %v478 = vrot.slane %v473, %v477
    %v496 = vunpack.c.l.b16 %v457
    %v497 = vunpack.c.l.b16 %v458
    %v498 = vunpack.c.l.b16 %v459
    %v499 = vunpack.c.l.b16 %v460
    %v500 = vunpack.c.l.b16 %v461
    %v501 = vunpack.c.l.b16 %v462
    %v502 = vunpack.c.l.b16 %v463
    %v503 = vunpack.c.l.b16 %v464
    %v504 = vunpack.c.l.b16 %v465
    %v505 = vunpack.c.l.b16 %v466
    %v506 = vunpack.c.l.b16 %v467
    %v507 = vunpack.c.l.b16 %v468
    %v508 = vunpack.c.l.b16 %v469
    %v509 = vunpack.c.l.b16 %v470
    %v510 = vunpack.c.l.b16 %v471
    %v511 = vunpack.c.l.b16 %v472
    %v512 = vpack.c.b16 %v497, %v496
    %v513 = vpack.c.b16 %v499, %v498
    %v514 = vpack.c.b16 %v501, %v500
    %v515 = vpack.c.b16 %v503, %v502
    %v516 = vpack.c.b16 %v505, %v504
    %v517 = vpack.c.b16 %v507, %v506
    %v518 = vpack.c.b16 %v509, %v508
    %v519 = vpack.c.b16 %v511, %v510
    %528 = vmatprep.subr.bf16.mxu0 0
    %529 = vmatpush1.bf16.msra.mxu0 %v512
    %530 = vmatprep.subr.bf16.mxu0 0
    %531 = vmatpush1.bf16.msra.mxu0 %v513
    %532 = vmatprep.subr.bf16.mxu0 0
    %533 = vmatpush1.bf16.msra.mxu0 %v514
    %534 = vmatprep.subr.bf16.mxu0 0
    %535 = vmatpush1.bf16.msra.mxu0 %v515
    %536 = vmatprep.subr.bf16.mxu0 0
    %537 = vmatpush1.bf16.msra.mxu0 %v516
    %538 = vmatprep.subr.bf16.mxu0 0
    %539 = vmatpush1.bf16.msra.mxu0 %v517
    %540 = vmatprep.subr.bf16.mxu0 0
    %541 = vmatpush1.bf16.msra.mxu0 %v518
    %542 = vmatprep.subr.bf16.mxu0 0
    %543 = vmatpush1.bf16.msra.mxu0 %v519
    %544 = vmatprep.subr.bf16.mxu0 0
    %545 = vmatpush1.bf16.msra.mxu0 0
    %546 = vmatprep.subr.bf16.mxu0 0
    %547 = vmatpush1.bf16.msra.mxu0 0
    %548 = vmatprep.subr.bf16.mxu0 0
    %549 = vmatpush1.bf16.msra.mxu0 0
    %550 = vmatprep.subr.bf16.mxu0 0
    %551 = vmatpush1.bf16.msra.mxu0 0
    %552 = vmatprep.subr.bf16.mxu0 0
    %553 = vmatpush1.bf16.msra.mxu0 0
    %554 = vmatprep.subr.bf16.mxu0 0
    %555 = vmatpush1.bf16.msra.mxu0 0
    %556 = vmatprep.subr.bf16.mxu0 0
    %557 = vmatpush1.bf16.msra.mxu0 0
    %558 = vmatprep.subr.bf16.mxu0 0
    %559 = vmatpush1.bf16.msra.mxu0 0
    %560 = vmatprep.mubr.bf16.mxu0 0
    %561 = vmatmul.mubr.bf16.gmra.mrb[0].mxu0 %v456
    %v562 = vpop.f32.mrb[0].mxu0
    %v563 = vadd.f32 %v478, %v562
    %v564 = vpop.f32.mrb[0].mxu0
    %v565 = vpop.f32.mrb[0].mxu0
    %v566 = vpop.f32.mrb[0].mxu0
    %567 = vdwg.mxu0
    %vm568 = vcmask 64512
    %569 = vst.msk [vmem:[#allocation5] sm:$0xff] %vm568, %v563
    // Predicated region
    $region34: #{tpu_custom_call.1} parent=1 // pred_check
      _
    $region35: #{tpu_custom_call.1} parent=1 // pred_check_branch
      %571 = sbr.rel (0) target = $region37
    $region36: #{tpu_custom_call.1} parent=1 // pred_region
      %s573 = ssub.s32 128, 128
      %574 = vsyncadd [#allocation4], %s573
      %s576 = sshll.u32 [#allocation5], 4
      %s577 = int_to_ptr.vmem [resolvable:$true] %s576
      %579 = dma.vmem_to_hbm [thread:$0]  %s577, 128, %s7, [#allocation4]
    $region37: #{tpu_custom_call.1} parent=1 // pred_fallthru
      _
    // Predicated region
    $region38: #{tpu_custom_call.1} parent=1 // pred_check
      _
    $region39: #{tpu_custom_call.1} parent=1 // pred_check_branch
      %581 = sbr.rel (0) target = $region41
    $region40: #{tpu_custom_call.1} parent=1 // pred_region
      %582 = dma.done [#allocation4], 128
    $region41: #{tpu_custom_call.1} parent=1 // pred_fallthru
      _
    %583 = vsyncpa [#allocation3], 1
    %584 = vsyncpa [#allocation4], 1

</llo_original>
